<compile_context>
chip_gen: v7x
topology: tpu7x:2x2x1
jax: 0.10.0
libtpu: 0.0.40
codegen_flags: <defaults>
</compile_context>

<pallas_src>
import math
import jax
import jax.numpy as jnp
from jax.experimental import pallas as pl
from jax.experimental.pallas import tpu as pltpu

_VMEM_LIMIT = 64 * 1024 * 1024


# ---------------------------------------------------------------------------
# Tiling helpers
# ---------------------------------------------------------------------------

def _row_tile(m, candidates):
    """Return (tile, padded_extent): largest candidate dividing m; else the full
    (small) extent; else pad m up to a multiple of the smallest candidate."""
    for t in candidates:
        if m % t == 0:
            return t, m
    small = candidates[-1]
    if m <= small:
        return m, m
    return small, ((m + small - 1) // small) * small


def _resident_spec(block_shape, index_map):
    """Grid-invariant block: request single buffering (no double-buffer waste)."""
    try:
        return pl.BlockSpec(block_shape, index_map, pipeline_mode=pl.Buffered(1))
    except (AttributeError, TypeError):          # older jax: default buffering
        return pl.BlockSpec(block_shape, index_map)


# ---------------------------------------------------------------------------
# Fused linear kernel: y = x @ [W_0 | W_1 | ...] + [b_0 | b_1 | ...]
# bf16 MXU operands, f32 accumulation; each D_out slab goes to its own output.
# ---------------------------------------------------------------------------

def _make_fused_linear_kernel(n_out):
    def kernel(x_ref, w_ref, b_ref, *o_refs):
        y = jnp.dot(x_ref[...].astype(jnp.bfloat16), w_ref[...],
                    preferred_element_type=jnp.float32) + b_ref[...]
        d = o_refs[0].shape[-1]
        for i in range(n_out):
            o_refs[i][...] = y[:, i * d:(i + 1) * d].astype(o_refs[i].dtype)
    return kernel


def fused_linear_pallas(x, w, b, n_out):
    """x: (M, D_in) f32; w: (D_in, n_out*D_out) bf16; b: (1, n_out*D_out) f32."""
    M, D_in = x.shape
    N = w.shape[1]
    D_out = N // n_out

    tm, M_pad = _row_tile(M, (512, 256, 128))
    if M_pad != M:
        x = jnp.pad(x, ((0, M_pad - M), (0, 0)))
    grid = (M_pad // tm,)

    outs = pl.pallas_call(
        _make_fused_linear_kernel(n_out),
        out_shape=tuple(jax.ShapeDtypeStruct((M_pad, D_out), jnp.float32)
                        for _ in range(n_out)),
        grid_spec=pltpu.PrefetchScalarGridSpec(
            num_scalar_prefetch=0,
            grid=grid,
            in_specs=[
                pl.BlockSpec((tm, D_in), lambda i: (i, 0)),
                _resident_spec((D_in, N), lambda i: (0, 0)),     # resident weight
                _resident_spec((1, N), lambda i: (0, 0)),        # resident bias
            ],
            out_specs=[pl.BlockSpec((tm, D_out), lambda i: (i, 0))
                       for _ in range(n_out)],
        ),
        compiler_params=pltpu.CompilerParams(
            dimension_semantics=("parallel",),
            vmem_limit_bytes=_VMEM_LIMIT),
    )(x, w, b)

    if not isinstance(outs, (tuple, list)):
        outs = (outs,)
    if M_pad != M:
        outs = tuple(o[:M] for o in outs)
    return list(outs)


# ---------------------------------------------------------------------------
# Attention kernel: one (batch, q-tile) step, all heads batched per step.
# Inputs are (B, S, h, d_k) views; heads become the batch dim of two einsums
# (bf16 operands, f32 accumulation); the output block is (1, tq, h, d_k).
# ---------------------------------------------------------------------------

def _make_attention_kernel(mask_rank):
    def kernel(*refs):
        if mask_rank is None:
            q_ref, k_ref, v_ref, o_ref = refs
        else:
            q_ref, k_ref, v_ref, m_ref, o_ref = refs

        # (S, h, d_k) -> (h, S, d_k); cast to bf16 for the MXU.
        q = jnp.transpose(q_ref[0], (1, 0, 2)).astype(jnp.bfloat16)   # (h, tq, d_k)
        k = jnp.transpose(k_ref[0], (1, 0, 2)).astype(jnp.bfloat16)   # (h, Sk, d_k)
        v = jnp.transpose(v_ref[0], (1, 0, 2)).astype(jnp.bfloat16)   # (h, Sk, d_k)

        # 1/sqrt(d_k) is already folded into wq/bq — no per-tile scale here.
        s = jnp.einsum("hqd,hkd->hqk", q, k,
                       preferred_element_type=jnp.float32)            # (h, tq, Sk)

        if mask_rank is not None:
            mz = m_ref[...] if mask_rank == 2 else m_ref[0]           # int8, 1 where mask==0
            s = jnp.where((mz != 0)[None, :, :], jnp.float32(-1e9), s)

        # Numerically-stable softmax, f32 everywhere (safe on v5e's VPU/EUP).
        mx = jnp.max(s, axis=-1, keepdims=True)
        e = jnp.exp(s - mx)
        p = e * pl.reciprocal(jnp.sum(e, axis=-1, keepdims=True), approx=False)

        o = jnp.einsum("hqk,hkd->hqd", p.astype(jnp.bfloat16), v,
                       preferred_element_type=jnp.float32)            # (h, tq, d_k)
        o_ref[0] = jnp.transpose(o, (1, 0, 2)).astype(o_ref.dtype)    # (tq, h, d_k)
    return kernel


def attention_pallas(q, k, v, mask_is_zero, *, h):
    """q: (B, Sq, h, d_k); k, v: (B, Sk, h, d_k);
    mask_is_zero: None | int8 (Sq, Sk) | int8 (B, Sq, Sk)  (1 == masked out)."""
    B, Sq, H, d_k = q.shape
    Sk = k.shape[1]

    tq, Sq_pad = _row_tile(Sq, (256, 128))
    if Sq_pad != Sq:
        q = jnp.pad(q, ((0, 0), (0, Sq_pad - Sq), (0, 0), (0, 0)))
    grid = (B, Sq_pad // tq)

    in_specs = [
        pl.BlockSpec((1, tq, H, d_k), lambda b, i: (b, i, 0, 0)),
        pl.BlockSpec((1, Sk, H, d_k), lambda b, i: (b, 0, 0, 0)),   # per-batch resident
        pl.BlockSpec((1, Sk, H, d_k), lambda b, i: (b, 0, 0, 0)),
    ]
    args = [q, k, v]
    mask_rank = None
    if mask_is_zero is not None:
        mz = mask_is_zero
        if mz.ndim == 2:
            if Sq_pad != Sq:
                mz = jnp.pad(mz, ((0, Sq_pad - Sq), (0, 0)))
            in_specs.append(pl.BlockSpec((tq, Sk), lambda b, i: (i, 0)))
            mask_rank = 2
        else:
            mz = jnp.broadcast_to(mz, (B, Sq, Sk))
            if Sq_pad != Sq:
                mz = jnp.pad(mz, ((0, 0), (0, Sq_pad - Sq), (0, 0)))
            in_specs.append(pl.BlockSpec((1, tq, Sk), lambda b, i: (b, i, 0)))
            mask_rank = 3
        args.append(mz)

    out = pl.pallas_call(
        _make_attention_kernel(mask_rank),
        out_shape=jax.ShapeDtypeStruct((B, Sq_pad, H, d_k), q.dtype),
        grid_spec=pltpu.PrefetchScalarGridSpec(
            num_scalar_prefetch=0,
            grid=grid,
            in_specs=in_specs,
            out_specs=pl.BlockSpec((1, tq, H, d_k), lambda b, i: (b, i, 0, 0)),
        ),
        compiler_params=pltpu.CompilerParams(
            dimension_semantics=("parallel", "parallel"),
            vmem_limit_bytes=_VMEM_LIMIT),
    )(*args)

    return out[:, :Sq] if Sq_pad != Sq else out


# ---------------------------------------------------------------------------
# One-time parameter preparation (scale folding, fused concats, bf16 weights)
# ---------------------------------------------------------------------------

def prepare_params(params, h):
    d_model = params["wq"].shape[0]
    d_k = d_model // h
    scale = jnp.float32(1.0 / math.sqrt(d_k))
    wq = params["wq"] * scale          # fold 1/sqrt(d_k) into the Q projection
    bq = params["bq"] * scale

    def w_(x):
        return x.astype(jnp.bfloat16)

    def b_(x):
        return x.reshape(1, -1).astype(jnp.float32)

    return {
        "w_qkv": w_(jnp.concatenate([wq, params["wk"], params["wv"]], axis=1)),
        "b_qkv": b_(jnp.concatenate([bq, params["bk"], params["bv"]])),
        "w_q": w_(wq), "b_q": b_(bq),
        "w_kv": w_(jnp.concatenate([params["wk"], params["wv"]], axis=1)),
        "b_kv": b_(jnp.concatenate([params["bk"], params["bv"]])),
        "w_k": w_(params["wk"]), "b_k": b_(params["bk"]),
        "w_v": w_(params["wv"]), "b_v": b_(params["bv"]),
        "w_o": w_(params["wo"]), "b_o": b_(params["bo"]),
    }


# ---------------------------------------------------------------------------
# Forward pass matching MultiheadAttention.forward (eval mode)
# ---------------------------------------------------------------------------

def multihead_attention(prep, query, key, value, mask=None, *, h):
    B, Sq, D = query.shape
    Sk = key.shape[1]
    d_k = D // h

    if query is key and key is value:
        # Self-attention: one fused (D, 3D) projection — single activation read.
        q2, k2, v2 = fused_linear_pallas(query.reshape(B * Sq, D),
                                         prep["w_qkv"], prep["b_qkv"], 3)
    else:
        (q2,) = fused_linear_pallas(query.reshape(B * Sq, D),
                                    prep["w_q"], prep["b_q"], 1)
        if key is value:
            k2, v2 = fused_linear_pallas(key.reshape(B * Sk, D),
                                         prep["w_kv"], prep["b_kv"], 2)
        else:
            (k2,) = fused_linear_pallas(key.reshape(B * Sk, D),
                                        prep["w_k"], prep["b_k"], 1)
            (v2,) = fused_linear_pallas(value.reshape(B * Sk, D),
                                        prep["w_v"], prep["b_v"], 1)

    # (B, S, h, d_k) views: free reshapes, no (B, h, S, d_k) HBM transposes.
    q4 = q2.reshape(B, Sq, h, d_k)
    k4 = k2.reshape(B, Sk, h, d_k)
    v4 = v2.reshape(B, Sk, h, d_k)

    # masked_fill(mask == 0, -1e9) semantics, robust to fractional mask values.
    mz = None if mask is None else (mask == 0).astype(jnp.int8)

    x = attention_pallas(q4, k4, v4, mz, h=h)                   # (B, Sq, h, d_k)

    (out,) = fused_linear_pallas(x.reshape(B * Sq, D), prep["w_o"], prep["b_o"], 1)
    return out.reshape(B, Sq, D)


# ---------------------------------------------------------------------------
# Deterministic parameter init (mirrors nn.Linear(d_model, d_model) x 4)
# ---------------------------------------------------------------------------

def init_params(key, d_model):
    ks = jax.random.split(key, 8)
    bound = 1.0 / math.sqrt(d_model)

    def lin(kw, kb):
        # stored as (in, out) so kernels do x @ w directly (== x @ W_torch.T)
        w = jax.random.uniform(kw, (d_model, d_model), jnp.float32, -bound, bound)
        b = jax.random.uniform(kb, (d_model,), jnp.float32, -bound, bound)
        return w, b

    wq, bq = lin(ks[0], ks[1])
    wk, bk = lin(ks[2], ks[3])
    wv, bv = lin(ks[4], ks[5])
    wo, bo = lin(ks[6], ks[7])
    return dict(wq=wq, bq=bq, wk=wk, bk=bk, wv=wv, bv=bv, wo=wo, bo=bo)


# ---------------------------------------------------------------------------
# Pure-JAX f32 reference (for sanity checks)
# ---------------------------------------------------------------------------

def reference_mha(params, query, key, value, mask, h):
    B, Sq, D = query.shape
    Sk = key.shape[1]
    d_k = D // h

    def proj(x, w, b):
        S = x.shape[1]
        y = x.reshape(B * S, D) @ w + b
        return y.reshape(B, S, h, d_k).transpose(0, 2, 1, 3)

    q = proj(query, params["wq"], params["bq"])
    k = proj(key,   params["wk"], params["bk"])
    v = proj(value, params["wv"], params["bv"])
    scores = jnp.einsum("bhqd,bhkd->bhqk", q, k) / jnp.sqrt(jnp.float32(d_k))
    if mask is not None:
        m = jnp.broadcast_to(mask, (B, Sq, Sk)) if mask.ndim == 2 else mask
        scores = jnp.where(m[:, None, :, :] == 0, -1e9, scores)
    p = jax.nn.softmax(scores, axis=-1)
    x = jnp.einsum("bhqk,bhkd->bhqd", p, v)
    x = x.transpose(0, 2, 1, 3).reshape(B, Sq, D)
    return (x.reshape(B * Sq, D) @ params["wo"] + params["bo"]).reshape(B, Sq, D)


# ---------------------------------------------------------------------------

if __name__ == "__main__":
    B, S, d_model, h = 2, 8, 32, 4

    root = jax.random.PRNGKey(0)
    k_params, k_x, k_k, k_v = jax.random.split(root, 4)

    params = init_params(k_params, d_model)
    prep = prepare_params(params, h)        # one-time: scale fold, fused bf16 weights
    x = jax.random.normal(k_x, (B, S, d_model), jnp.float32)

    # batch-invariant causal mask, passed as a single (S, S) array
    causal = jnp.tril(jnp.ones((S, S), jnp.float32))

    # 1) self-attention (fused QKV path) with causal mask
    out = multihead_attention(prep, x, x, x, mask=causal, h=h)
    out = jax.block_until_ready(out)
    ref = reference_mha(params, x, x, x, causal, h)
    assert out.shape == (B, S, d_model)
    assert jnp.allclose(out, ref, atol=3e-2, rtol=3e-2), "self-attention mismatch"

    # 2) cross-attention with separate K/V projections, no mask
    k_in = jax.random.normal(k_k, (B, S, d_model), jnp.float32)
    v_in = jax.random.normal(k_v, (B, S, d_model), jnp.float32)
    out2 = multihead_attention(prep, x, k_in, v_in, mask=None, h=h)
    out2 = jax.block_until_ready(out2)
    ref2 = reference_mha(params, x, k_in, v_in, None, h)
    assert jnp.allclose(out2, ref2, atol=3e-2, rtol=3e-2), "cross-attention mismatch"

    # 3) encoder-decoder style (key is value): fused KV projection path
    out3 = multihead_attention(prep, x, k_in, k_in, mask=None, h=h)
    out3 = jax.block_until_ready(out3)
    ref3 = reference_mha(params, x, k_in, k_in, None, h)
    assert jnp.allclose(out3, ref3, atol=3e-2, rtol=3e-2), "fused-KV mismatch"

    print("KERNEL_OK")
</pallas_src>

<mosaic_0001>
module attributes {stable_mosaic.version = 11 : i64} {
  func.func @kernel(%arg0: i32, %arg1: memref<16x32xf32, #tpu.memory_space<vmem>>, %arg2: memref<32x96xbf16, #tpu.memory_space<vmem>>, %arg3: memref<1x96xf32, #tpu.memory_space<vmem>>, %arg4: memref<16x32xf32, #tpu.memory_space<vmem>>, %arg5: memref<16x32xf32, #tpu.memory_space<vmem>>, %arg6: memref<16x32xf32, #tpu.memory_space<vmem>>) attributes {dimension_semantics = [#tpu.dimension_semantics<parallel>], iteration_bounds = array<i64: 1>, scalar_prefetch = 0 : i64, scratch_operands = 0 : i64, tpu.core_type = #tpu.core_type<tc>, window_params = [{transform_indices = @transform_0, window_bounds = array<i64: 16, 32>}, {pipeline_mode = #tpu.pipeline_mode<synchronous>, transform_indices = @transform_1, window_bounds = array<i64: 32, 96>}, {pipeline_mode = #tpu.pipeline_mode<synchronous>, transform_indices = @transform_2, window_bounds = array<i64: 1, 96>}, {transform_indices = @transform_3, window_bounds = array<i64: 16, 32>}, {transform_indices = @transform_4, window_bounds = array<i64: 16, 32>}, {transform_indices = @transform_5, window_bounds = array<i64: 16, 32>}]} {
    %c0 = arith.constant 0 : index
    %c0_0 = arith.constant 0 : index
    %0 = vector.load %arg1[%c0, %c0_0] : memref<16x32xf32, #tpu.memory_space<vmem>>, vector<16x32xf32>
    %1 = arith.truncf %0 : vector<16x32xf32> to vector<16x32xbf16>
    %c0_1 = arith.constant 0 : index
    %c0_2 = arith.constant 0 : index
    %2 = vector.load %arg2[%c0_1, %c0_2] : memref<32x96xbf16, #tpu.memory_space<vmem>>, vector<32x96xbf16>
    %cst = arith.constant dense<0.000000e+00> : vector<16x96xf32>
    %3 = tpu.matmul %1, %2, %cst {dimension_numbers = #tpu.dot_dimension_numbers<[1], [0], [0], [1], [0, 0, 1, 1], [], []>} : vector<16x32xbf16>, vector<32x96xbf16>, vector<16x96xf32> -> vector<16x96xf32>
    %c0_3 = arith.constant 0 : index
    %c0_4 = arith.constant 0 : index
    %4 = vector.load %arg3[%c0_3, %c0_4] : memref<1x96xf32, #tpu.memory_space<vmem>>, vector<1x96xf32>
    %5 = vector.broadcast %4 : vector<1x96xf32> to vector<16x96xf32>
    %6 = arith.addf %3, %5 : vector<16x96xf32>
    %7 = vector.extract_strided_slice %6 {offsets = [0, 0], sizes = [16, 32], strides = [1, 1]} : vector<16x96xf32> to vector<16x32xf32>
    %c0_5 = arith.constant 0 : index
    %c0_6 = arith.constant 0 : index
    %8 = vector.load %arg4[%c0_5, %c0_6] : memref<16x32xf32, #tpu.memory_space<vmem>>, vector<16x32xf32>
    tpu.vector_store %arg4[%c0_5, %c0_6], %7 {strides = array<i32>} : memref<16x32xf32, #tpu.memory_space<vmem>>, vector<16x32xf32>,
    %9 = vector.extract_strided_slice %6 {offsets = [0, 32], sizes = [16, 32], strides = [1, 1]} : vector<16x96xf32> to vector<16x32xf32>
    %c0_7 = arith.constant 0 : index
    %c0_8 = arith.constant 0 : index
    %10 = vector.load %arg5[%c0_7, %c0_8] : memref<16x32xf32, #tpu.memory_space<vmem>>, vector<16x32xf32>
    tpu.vector_store %arg5[%c0_7, %c0_8], %9 {strides = array<i32>} : memref<16x32xf32, #tpu.memory_space<vmem>>, vector<16x32xf32>,
    %11 = vector.extract_strided_slice %6 {offsets = [0, 64], sizes = [16, 32], strides = [1, 1]} : vector<16x96xf32> to vector<16x32xf32>
    %c0_9 = arith.constant 0 : index
    %c0_10 = arith.constant 0 : index
    %12 = vector.load %arg6[%c0_9, %c0_10] : memref<16x32xf32, #tpu.memory_space<vmem>>, vector<16x32xf32>
    tpu.vector_store %arg6[%c0_9, %c0_10], %11 {strides = array<i32>} : memref<16x32xf32, #tpu.memory_space<vmem>>, vector<16x32xf32>,
    return
  }
  func.func @transform_0(%arg0: i32) -> (i32, i32) {
    %c0_i32 = arith.constant 0 : i32
    %c0_i32_0 = arith.constant 0 : i32
    return %arg0, %c0_i32 : i32, i32
  }
  func.func @transform_1(%arg0: i32) -> (i32, i32) {
    %c0_i32 = arith.constant 0 : i32
    %c0_i32_0 = arith.constant 0 : i32
    %c0_i32_1 = arith.constant 0 : i32
    return %c0_i32, %c0_i32_0 : i32, i32
  }
  func.func @transform_2(%arg0: i32) -> (i32, i32) {
    %c0_i32 = arith.constant 0 : i32
    %c0_i32_0 = arith.constant 0 : i32
    %c0_i32_1 = arith.constant 0 : i32
    return %c0_i32, %c0_i32_0 : i32, i32
  }
  func.func @transform_3(%arg0: i32) -> (i32, i32) {
    %c0_i32 = arith.constant 0 : i32
    %c0_i32_0 = arith.constant 0 : i32
    return %arg0, %c0_i32 : i32, i32
  }
  func.func @transform_4(%arg0: i32) -> (i32, i32) {
    %c0_i32 = arith.constant 0 : i32
    %c0_i32_0 = arith.constant 0 : i32
    return %arg0, %c0_i32 : i32, i32
  }
  func.func @transform_5(%arg0: i32) -> (i32, i32) {
    %c0_i32 = arith.constant 0 : i32
    %c0_i32_0 = arith.constant 0 : i32
    return %arg0, %c0_i32 : i32, i32
  }
}

</mosaic_0001>

<llo_original>
// kernel: tpu_custom_call.1
$region0: #{tpu_custom_call.1}
  #allocation0 [shape = 'u32[]', space=smem, size = 0x4, offset = 0x4, fixed_abs, tag = 'smem constant byte address 0x4 - core index']
  #allocation1 [shape = 'u32[144,128]{1,0:T(1,128)}', space=vmem, size = 0x12000, scoped, tag = 'internal scratch']
  %s0 = inlined_call_operand.hbm [shape: f32[16,32], index: 0, kind: input, shape index: {}]
  %s1 = inlined_call_operand.hbm [shape: bf16[32,96], index: 1, kind: input, shape index: {}]
  %s2 = inlined_call_operand.hbm [shape: f32[1,96], index: 2, kind: input, shape index: {}]
  %s3 = inlined_call_operand.hbm [shape: f32[16,32], index: 3, kind: output, shape index: {0}]
  %s4 = inlined_call_operand.hbm [shape: f32[16,32], index: 4, kind: output, shape index: {1}]
  %s5 = inlined_call_operand.hbm [shape: f32[16,32], index: 5, kind: output, shape index: {2}]
  %6 = xla_tuple %s3, %s4, %s5
  %s7 = sld [smem:[#allocation0]]
  $region50: #{tpu_custom_call.1} parent=0
    _
  %s9 = ssub.s32 1, %s7
  %s10 = scalar_select 0, %s9, %s7
  $region1: #{tpu_custom_call.1} parent=0
    #allocation2 [shape = 'u8[8192]{0}', space=vmem, size = 0x2000, scoped, tag = 'input window, operand 0, single buffered']
    #allocation3 [shape = 's32[1]{0}', space=sflag, size = 0x4, scoped, tag = 'scoped memory for tpu_custom_call.1']
    #allocation4 [shape = 's32[1]{0}', space=sflag, size = 0x4, scoped, tag = 'scoped memory for tpu_custom_call.1']
    #allocation5 [shape = 'u8[8192]{0}', space=vmem, size = 0x2000, scoped, tag = 'input window, operand 1, single buffered']
    #allocation6 [shape = 's32[1]{0}', space=sflag, size = 0x4, scoped, tag = 'scoped memory for tpu_custom_call.1']
    #allocation7 [shape = 'u8[512]{0}', space=vmem, size = 0x400, scoped, tag = 'input window, operand 2, single buffered']
    #allocation8 [shape = 'u8[8192]{0}', space=vmem, size = 0x2000, scoped, tag = 'output window, operand 0, single buffered']
    #allocation9 [shape = 'u8[8192]{0}', space=vmem, size = 0x2000, scoped, tag = 'output window, operand 1, single buffered']
    #allocation10 [shape = 's32[1]{0}', space=sflag, size = 0x4, scoped, tag = 'scoped memory for tpu_custom_call.1']
    #allocation11 [shape = 'u8[8192]{0}', space=vmem, size = 0x2000, scoped, tag = 'output window, operand 2, single buffered']
    %11 = vsyncpa [#allocation3], 0
    %12 = vsyncpa [#allocation6], 0
    %13 = vsyncpa [#allocation4], 0
    %14 = vsyncpa [#allocation10], 0
    // Predicated region
    $region2: #{tpu_custom_call.1} parent=1 // pred_check
      _
    $region3: #{tpu_custom_call.1} parent=1 // pred_check_branch
      %16 = sbr.rel (0) target = $region5
    $region4: #{tpu_custom_call.1} parent=1 // pred_region
      %s18 = ssub.s32 256, 256
      %19 = vsyncadd [#allocation3], %s18
      %s20 = sshll.u32 [#allocation2], 4
      %s21 = int_to_ptr.vmem [resolvable:$true] %s20
      %26 = dma.hbm_to_vmem [thread:$0]  %s0, 256, %s21, [#allocation3], 128, 128, 8
    $region5: #{tpu_custom_call.1} parent=1 // pred_fallthru
      _
    // Predicated region
    $region6: #{tpu_custom_call.1} parent=1 // pred_check
      _
    $region7: #{tpu_custom_call.1} parent=1 // pred_check_branch
      %28 = sbr.rel (0) target = $region9
    $region8: #{tpu_custom_call.1} parent=1 // pred_region
      %s30 = ssub.s32 256, 256
      %31 = vsyncadd [#allocation6], %s30
      %s32 = sshll.u32 [#allocation5], 4
      %s33 = int_to_ptr.vmem [resolvable:$true] %s32
      %38 = dma.hbm_to_vmem [thread:$0]  %s1, 256, %s33, [#allocation6], 64, 64, 4
    $region9: #{tpu_custom_call.1} parent=1 // pred_fallthru
      _
    // Predicated region
    $region10: #{tpu_custom_call.1} parent=1 // pred_check
      _
    $region11: #{tpu_custom_call.1} parent=1 // pred_check_branch
      %40 = sbr.rel (0) target = $region13
    $region12: #{tpu_custom_call.1} parent=1 // pred_region
      %s42 = ssub.s32 16, 16
      %43 = vsyncadd [#allocation6], %s42
      %s45 = sshll.u32 [#allocation7], 4
      %s46 = int_to_ptr.vmem [resolvable:$true] %s45
      %48 = dma.hbm_to_vmem [thread:$0]  %s2, 16, %s46, [#allocation6]
    $region13: #{tpu_custom_call.1} parent=1 // pred_fallthru
      _
    // Predicated region
    $region14: #{tpu_custom_call.1} parent=1 // pred_check
      _
    $region15: #{tpu_custom_call.1} parent=1 // pred_check_branch
      %50 = sbr.rel (0) target = $region17
    $region16: #{tpu_custom_call.1} parent=1 // pred_region
      %51 = dma.done [#allocation3], 256
    $region17: #{tpu_custom_call.1} parent=1 // pred_fallthru
      _
    // Predicated region
    $region18: #{tpu_custom_call.1} parent=1 // pred_check
      _
    $region19: #{tpu_custom_call.1} parent=1 // pred_check_branch
      %53 = sbr.rel (0) target = $region21
    $region20: #{tpu_custom_call.1} parent=1 // pred_region
      %54 = dma.done [#allocation6], 256
    $region21: #{tpu_custom_call.1} parent=1 // pred_fallthru
      _
    // Predicated region
    $region22: #{tpu_custom_call.1} parent=1 // pred_check
      _
    $region23: #{tpu_custom_call.1} parent=1 // pred_check_branch
      %56 = sbr.rel (0) target = $region25
    $region24: #{tpu_custom_call.1} parent=1 // pred_region
      %57 = dma.done [#allocation6], 16
    $region25: #{tpu_custom_call.1} parent=1 // pred_fallthru
      _
    %v59 = vld [vmem:[#allocation2] sm:$0xff]
    %v60 = vld [vmem:[#allocation2 + $0x8] sm:$0xff]
    %v61 = vpack.c.bf16 %v60, %v59
    %v62 = vld [vmem:[#allocation5] sm:$0xf]
    %v63 = vld [vmem:[#allocation5 + $0x4] sm:$0xf]
    %v64 = vld [vmem:[#allocation5 + $0x8] sm:$0xf]
    %v65 = vld [vmem:[#allocation5 + $0xc] sm:$0xf]
    %v66 = vld [vmem:[#allocation7] sm:$0x1]
    %v68 = vlaneseq
    %v69 = vshrl.u32 %v68, 7
    %v70 = vsub.s32 0, %v69
    %v71 = vrot.slane %v66, %v70
    %v77 = vunpack.c.l.b16 %v62
    %v78 = vunpack.c.l.b16 %v63
    %v79 = vunpack.c.l.b16 %v64
    %v80 = vunpack.c.l.b16 %v65
    %v81 = vpack.c.b16 %v78, %v77
    %v82 = vpack.c.b16 %v80, %v79
    %vm85 = vcmask 261120
    %v87 = vsel %vm85, %v61, 0
    %89 = vmatprep.subr.bf16.mxu0 0
    %90 = vmatpush1.bf16.msra.mxu0 %v81
    %91 = vmatprep.subr.bf16.mxu0 0
    %92 = vmatpush1.bf16.msra.mxu0 %v82
    %93 = vmatprep.subr.bf16.mxu0 0
    %94 = vmatpush1.bf16.msra.mxu0 0
    %95 = vmatprep.subr.bf16.mxu0 0
    %96 = vmatpush1.bf16.msra.mxu0 0
    %97 = vmatprep.subr.bf16.mxu0 0
    %98 = vmatpush1.bf16.msra.mxu0 0
    %99 = vmatprep.subr.bf16.mxu0 0
    %100 = vmatpush1.bf16.msra.mxu0 0
    %101 = vmatprep.subr.bf16.mxu0 0
    %102 = vmatpush1.bf16.msra.mxu0 0
    %103 = vmatprep.subr.bf16.mxu0 0
    %104 = vmatpush1.bf16.msra.mxu0 0
    %105 = vmatprep.subr.bf16.mxu0 0
    %106 = vmatpush1.bf16.msra.mxu0 0
    %107 = vmatprep.subr.bf16.mxu0 0
    %108 = vmatpush1.bf16.msra.mxu0 0
    %109 = vmatprep.subr.bf16.mxu0 0
    %110 = vmatpush1.bf16.msra.mxu0 0
    %111 = vmatprep.subr.bf16.mxu0 0
    %112 = vmatpush1.bf16.msra.mxu0 0
    %113 = vmatprep.subr.bf16.mxu0 0
    %114 = vmatpush1.bf16.msra.mxu0 0
    %115 = vmatprep.subr.bf16.mxu0 0
    %116 = vmatpush1.bf16.msra.mxu0 0
    %117 = vmatprep.subr.bf16.mxu0 0
    %118 = vmatpush1.bf16.msra.mxu0 0
    %119 = vmatprep.subr.bf16.mxu0 0
    %120 = vmatpush1.bf16.msra.mxu0 0
    %121 = vmatprep.mubr.bf16.mxu0 0
    %122 = vmatmul.mubr.bf16.gmra.mrb[0].mxu0 %v87
    %v123 = vpop.f32.mrb[0].mxu0
    %v124 = vadd.f32 %v71, %v123
    %v125 = vpop.f32.mrb[0].mxu0
    %v126 = vpop.f32.mrb[0].mxu0
    %v127 = vadd.f32 %v71, %v126
    %v128 = vpop.f32.mrb[0].mxu0
    %129 = vdwg.mxu0
    %130 = vst.msk [vmem:[#allocation8] sm:$0xff] %vm85, %v124
    %131 = vst.msk [vmem:[#allocation8 + $0x8] sm:$0xff] %vm85, %v127
    %134 = vrot.lane.b32.xlu0 %v124, 96
    %v135 = vpop.permute.xlu0 %134
    %136 = vrot.lane.b32.xlu0 %v127, 96
    %v137 = vpop.permute.xlu0 %136
    %140 = vst.msk [vmem:[#allocation9] sm:$0xff] %vm85, %v135
    %141 = vst.msk [vmem:[#allocation9 + $0x8] sm:$0xff] %vm85, %v137
    %142 = vrot.lane.b32.xlu0 %v124, 64
    %v143 = vpop.permute.xlu0 %142
    %144 = vrot.lane.b32.xlu0 %v127, 64
    %v145 = vpop.permute.xlu0 %144
    %148 = vst.msk [vmem:[#allocation11] sm:$0xff] %vm85, %v143
    %149 = vst.msk [vmem:[#allocation11 + $0x8] sm:$0xff] %vm85, %v145
    // Predicated region
    $region26: #{tpu_custom_call.1} parent=1 // pred_check
      _
    $region27: #{tpu_custom_call.1} parent=1 // pred_check_branch
      %151 = sbr.rel (0) target = $region29
    $region28: #{tpu_custom_call.1} parent=1 // pred_region
      %s153 = ssub.s32 256, 256
      %154 = vsyncadd [#allocation4], %s153
      %s155 = sshll.u32 [#allocation8], 4
      %s156 = int_to_ptr.vmem [resolvable:$true] %s155
      %161 = dma.vmem_to_hbm [thread:$0]  %s156, 256, %s3, [#allocation4], 128, 128, 8
    $region29: #{tpu_custom_call.1} parent=1 // pred_fallthru
      _
    // Predicated region
    $region30: #{tpu_custom_call.1} parent=1 // pred_check
      _
    $region31: #{tpu_custom_call.1} parent=1 // pred_check_branch
      %163 = sbr.rel (0) target = $region33
    $region32: #{tpu_custom_call.1} parent=1 // pred_region
      %s165 = ssub.s32 256, 256
      %166 = vsyncadd [#allocation10], %s165
      %s167 = sshll.u32 [#allocation9], 4
      %s168 = int_to_ptr.vmem [resolvable:$true] %s167
      %173 = dma.vmem_to_hbm [thread:$0]  %s168, 256, %s4, [#allocation10], 128, 128, 8
    $region33: #{tpu_custom_call.1} parent=1 // pred_fallthru
      _
    // Predicated region
    $region34: #{tpu_custom_call.1} parent=1 // pred_check
      _
    $region35: #{tpu_custom_call.1} parent=1 // pred_check_branch
      %175 = sbr.rel (0) target = $region37
    $region36: #{tpu_custom_call.1} parent=1 // pred_region
      %s177 = ssub.s32 256, 256
      %178 = vsyncadd [#allocation10], %s177
      %s179 = sshll.u32 [#allocation11], 4
      %s180 = int_to_ptr.vmem [resolvable:$true] %s179
      %185 = dma.vmem_to_hbm [thread:$0]  %s180, 256, %s5, [#allocation10], 128, 128, 8
    $region37: #{tpu_custom_call.1} parent=1 // pred_fallthru
      _
    // Predicated region
    $region38: #{tpu_custom_call.1} parent=1 // pred_check
      _
    $region39: #{tpu_custom_call.1} parent=1 // pred_check_branch
      %187 = sbr.rel (0) target = $region41
    $region40: #{tpu_custom_call.1} parent=1 // pred_region
      %188 = dma.done [#allocation4], 256
    $region41: #{tpu_custom_call.1} parent=1 // pred_fallthru
      _
    // Predicated region
    $region42: #{tpu_custom_call.1} parent=1 // pred_check
      _
    $region43: #{tpu_custom_call.1} parent=1 // pred_check_branch
      %190 = sbr.rel (0) target = $region45
    $region44: #{tpu_custom_call.1} parent=1 // pred_region
      %191 = dma.done [#allocation10], 256
    $region45: #{tpu_custom_call.1} parent=1 // pred_fallthru
      _
    // Predicated region
    $region46: #{tpu_custom_call.1} parent=1 // pred_check
      _
    $region47: #{tpu_custom_call.1} parent=1 // pred_check_branch
      %193 = sbr.rel (0) target = $region49
    $region48: #{tpu_custom_call.1} parent=1 // pred_region
      %194 = dma.done [#allocation10], 256
    $region49: #{tpu_custom_call.1} parent=1 // pred_fallthru
      _
    %195 = vsyncpa [#allocation3], 1
    %196 = vsyncpa [#allocation6], 1
    %197 = vsyncpa [#allocation4], 1
    %198 = vsyncpa [#allocation10], 1

</llo_original>
